<compile_context>
chip_gen: v7x
topology: tpu7x:2x2x1
jax: 0.10.0
libtpu: 0.0.40
codegen_flags: <defaults>
</compile_context>

<pallas_src>
import functools

import jax
import jax.numpy as jnp
from jax import lax
from jax.experimental import pallas as pl
from jax.experimental.pallas import tpu as pltpu


def _prenorm_linear_kernel(x_ref, g_ref, beta_ref, w_ref, b_ref, o_ref, *, eps):
    """Fused: out = fn(LayerNorm(x)), with fn(z) = z @ W + b."""
    x = x_ref[...].astype(jnp.float32)                  # (tm, H)
    # --- LayerNorm over the last dim (biased variance, PyTorch semantics) ---
    mean = jnp.mean(x, axis=-1, keepdims=True)          # (tm, 1)
    xc = x - mean
    var = jnp.mean(xc * xc, axis=-1, keepdims=True)     # (tm, 1)
    xn = xc * lax.rsqrt(var + eps)                      # rsqrt -> EUP slot (cheap)
    xn = xn * g_ref[...] + beta_ref[...]                # affine; gamma/beta are (1, H)
    # --- fn = Linear(H, H) on the MXU, f32 accumulate ---
    y = jnp.dot(xn, w_ref[...], preferred_element_type=jnp.float32)   # (tm, H)
    y = y + b_ref[...]                                  # bias broadcast (1, H)
    o_ref[...] = y.astype(o_ref.dtype)


@functools.partial(jax.jit, static_argnames=("eps", "tm"))
def prenorm_forward(x, gamma, beta, w, b, *, eps=1e-5, tm=128):
    """x: (B, S, H); gamma/beta/b: (H,); w: (H, H). Returns Linear(LayerNorm(x))."""
    B, S, H = x.shape
    M = B * S
    x2 = x.reshape(M, H)

    # Row tile: multiple of 8 sublanes (f32), clamped to the problem size.
    tm = max(8, min(int(tm), pl.cdiv(M, 8) * 8))
    Mp = pl.cdiv(M, tm) * tm
    if Mp != M:
        # Pad rows so every grid step sees a full (tm, H) block; padded rows are
        # discarded after the call (LayerNorm of a zero row is finite: rsqrt(eps)).
        x2 = jnp.pad(x2, ((0, Mp - M), (0, 0)))

    g2 = gamma.reshape(1, H)
    bt2 = beta.reshape(1, H)
    b2 = b.reshape(1, H)
    grid_m = Mp // tm

    # Advisory cost so XLA overlaps neighbors (weight prefetch, etc.) correctly.
    cost = pl.CostEstimate(
        flops=2 * Mp * H * H + 8 * Mp * H,
        transcendentals=Mp,                              # one rsqrt per row
        bytes_accessed=4 * (2 * Mp * H + H * H + 3 * H),
    )

    # TODO(synk): for production hidden sizes (H >= 2048) add a K-reduction grid
    # axis (grid=(Mp//tm, H//tk), f32 VMEM accumulator, pl.when init/finalize) so
    # the (H, H) weight never has to sit fully resident in VMEM (v7x has 64 MiB).
    # TODO(synk): for H not a multiple of 128 (lane-sparse), pad H with a masked
    # LayerNorm or fall back to plain XLA; the demo uses H=128 so stores are unmasked.
    out2 = pl.pallas_call(
        functools.partial(_prenorm_linear_kernel, eps=eps),
        out_shape=jax.ShapeDtypeStruct((Mp, H), x.dtype),
        grid_spec=pltpu.PrefetchScalarGridSpec(
            num_scalar_prefetch=0,
            grid=(grid_m,),
            in_specs=[
                pl.BlockSpec((tm, H), lambda i: (i, 0)),   # x: streamed row tiles
                pl.BlockSpec((1, H), lambda i: (0, 0)),    # gamma: resident in VMEM
                pl.BlockSpec((1, H), lambda i: (0, 0)),    # beta:  resident in VMEM
                pl.BlockSpec((H, H), lambda i: (0, 0)),    # W:     resident in VMEM
                pl.BlockSpec((1, H), lambda i: (0, 0)),    # b:     resident in VMEM
            ],
            out_specs=pl.BlockSpec((tm, H), lambda i: (i, 0)),
        ),
        compiler_params=pltpu.CompilerParams(
            dimension_semantics=("parallel",),             # rows independent -> megacore on v7x
        ),
        cost_estimate=cost,
    )(x2, g2, bt2, w, b2)

    return out2[:M].reshape(B, S, H)


if __name__ == "__main__":
    key = jax.random.PRNGKey(0)
    kx, kg, kbt, kw, kb = jax.random.split(key, 5)

    # Small demo shape; H=128 keeps the last dim lane-dense (perf feedback).
    B, S, H = 2, 8, 128
    x = jax.random.normal(kx, (B, S, H), dtype=jnp.float32)

    # LayerNorm affine params (perturbed away from identity so the path is exercised).
    gamma = 1.0 + 0.1 * jax.random.normal(kg, (H,), dtype=jnp.float32)
    beta = 0.1 * jax.random.normal(kbt, (H,), dtype=jnp.float32)

    # Deterministic "fn" parameters: Linear(H, H), ~torch default init scale.
    bound = 1.0 / (H ** 0.5)
    w = jax.random.uniform(kw, (H, H), minval=-bound, maxval=bound, dtype=jnp.float32)
    b = jax.random.uniform(kb, (H,), minval=-bound, maxval=bound, dtype=jnp.float32)

    # tm=8 at this tiny M=16 gives a 2-step grid, exercising the pipelined path.
    out = prenorm_forward(x, gamma, beta, w, b, tm=8)
    out = jax.block_until_ready(out)

    # Pure-JAX reference: PreNorm(Linear).forward(x) == LayerNorm(x) @ W + b
    mean = jnp.mean(x, axis=-1, keepdims=True)
    var = jnp.mean((x - mean) ** 2, axis=-1, keepdims=True)
    xn = (x - mean) / jnp.sqrt(var + 1e-5)
    ref = (xn * gamma + beta) @ w + b

    assert out.shape == x.shape and out.dtype == x.dtype
    assert jnp.allclose(out, ref, atol=2e-3, rtol=2e-3), "mismatch vs reference"

    print("KERNEL_OK")
</pallas_src>

<mosaic_0001>
module attributes {stable_mosaic.version = 11 : i64} {
  func.func @_prenorm_linear_kernel(%arg0: i32, %arg1: memref<8x128xf32, #tpu.memory_space<vmem>>, %arg2: memref<1x128xf32, #tpu.memory_space<vmem>>, %arg3: memref<1x128xf32, #tpu.memory_space<vmem>>, %arg4: memref<128x128xf32, #tpu.memory_space<vmem>>, %arg5: memref<1x128xf32, #tpu.memory_space<vmem>>, %arg6: memref<8x128xf32, #tpu.memory_space<vmem>>) attributes {dimension_semantics = [#tpu.dimension_semantics<parallel>], iteration_bounds = array<i64: 2>, scalar_prefetch = 0 : i64, scratch_operands = 0 : i64, tpu.core_type = #tpu.core_type<tc>, window_params = [{transform_indices = @transform_0, window_bounds = array<i64: 8, 128>}, {pipeline_mode = #tpu.pipeline_mode<synchronous>, transform_indices = @transform_1, window_bounds = array<i64: 1, 128>}, {pipeline_mode = #tpu.pipeline_mode<synchronous>, transform_indices = @transform_2, window_bounds = array<i64: 1, 128>}, {pipeline_mode = #tpu.pipeline_mode<synchronous>, transform_indices = @transform_3, window_bounds = array<i64: 128, 128>}, {pipeline_mode = #tpu.pipeline_mode<synchronous>, transform_indices = @transform_4, window_bounds = array<i64: 1, 128>}, {transform_indices = @transform_5, window_bounds = array<i64: 8, 128>}]} {
    %c0 = arith.constant 0 : index
    %c0_0 = arith.constant 0 : index
    %0 = vector.load %arg1[%c0, %c0_0] : memref<8x128xf32, #tpu.memory_space<vmem>>, vector<8x128xf32>
    %cst = arith.constant dense<0.000000e+00> : vector<8xf32>
    %1 = vector.multi_reduction <add>, %0, %cst [1] : vector<8x128xf32> to vector<8xf32>
    %2 = vector.shape_cast %1 : vector<8xf32> to vector<8x1xf32>
    %cst_1 = arith.constant 1.280000e+02 : f32
    %3 = vector.broadcast %cst_1 : f32 to vector<8x1xf32>
    %4 = arith.divf %2, %3 : vector<8x1xf32>
    %5 = vector.broadcast %4 : vector<8x1xf32> to vector<8x128xf32>
    %6 = arith.subf %0, %5 : vector<8x128xf32>
    %7 = arith.mulf %6, %6 : vector<8x128xf32>
    %cst_2 = arith.constant dense<0.000000e+00> : vector<8xf32>
    %8 = vector.multi_reduction <add>, %7, %cst_2 [1] : vector<8x128xf32> to vector<8xf32>
    %9 = vector.shape_cast %8 : vector<8xf32> to vector<8x1xf32>
    %cst_3 = arith.constant 1.280000e+02 : f32
    %10 = vector.broadcast %cst_3 : f32 to vector<8x1xf32>
    %11 = arith.divf %9, %10 : vector<8x1xf32>
    %cst_4 = arith.constant 9.99999974E-6 : f32
    %12 = vector.broadcast %cst_4 : f32 to vector<8x1xf32>
    %13 = arith.addf %11, %12 : vector<8x1xf32>
    %14 = math.rsqrt %13 : vector<8x1xf32>
    %15 = vector.broadcast %14 : vector<8x1xf32> to vector<8x128xf32>
    %16 = arith.mulf %6, %15 : vector<8x128xf32>
    %c0_5 = arith.constant 0 : index
    %c0_6 = arith.constant 0 : index
    %17 = vector.load %arg2[%c0_5, %c0_6] : memref<1x128xf32, #tpu.memory_space<vmem>>, vector<1x128xf32>
    %18 = vector.broadcast %17 : vector<1x128xf32> to vector<8x128xf32>
    %19 = arith.mulf %16, %18 : vector<8x128xf32>
    %c0_7 = arith.constant 0 : index
    %c0_8 = arith.constant 0 : index
    %20 = vector.load %arg3[%c0_7, %c0_8] : memref<1x128xf32, #tpu.memory_space<vmem>>, vector<1x128xf32>
    %21 = vector.broadcast %20 : vector<1x128xf32> to vector<8x128xf32>
    %22 = arith.addf %19, %21 : vector<8x128xf32>
    %c0_9 = arith.constant 0 : index
    %c0_10 = arith.constant 0 : index
    %23 = vector.load %arg4[%c0_9, %c0_10] : memref<128x128xf32, #tpu.memory_space<vmem>>, vector<128x128xf32>
    %cst_11 = arith.constant dense<0.000000e+00> : vector<8x128xf32>
    %24 = tpu.matmul %22, %23, %cst_11 {dimension_numbers = #tpu.dot_dimension_numbers<[1], [0], [0], [1], [0, 0, 1, 1], [], []>} : vector<8x128xf32>, vector<128x128xf32>, vector<8x128xf32> -> vector<8x128xf32>
    %c0_12 = arith.constant 0 : index
    %c0_13 = arith.constant 0 : index
    %25 = vector.load %arg5[%c0_12, %c0_13] : memref<1x128xf32, #tpu.memory_space<vmem>>, vector<1x128xf32>
    %26 = vector.broadcast %25 : vector<1x128xf32> to vector<8x128xf32>
    %27 = arith.addf %24, %26 : vector<8x128xf32>
    %c0_14 = arith.constant 0 : index
    %c0_15 = arith.constant 0 : index
    %28 = vector.load %arg6[%c0_14, %c0_15] : memref<8x128xf32, #tpu.memory_space<vmem>>, vector<8x128xf32>
    tpu.vector_store %arg6[%c0_14, %c0_15], %27 {strides = array<i32>} : memref<8x128xf32, #tpu.memory_space<vmem>>, vector<8x128xf32>,
    return
  }
  func.func @transform_0(%arg0: i32) -> (i32, i32) {
    %c0_i32 = arith.constant 0 : i32
    %c0_i32_0 = arith.constant 0 : i32
    return %arg0, %c0_i32 : i32, i32
  }
  func.func @transform_1(%arg0: i32) -> (i32, i32) {
    %c0_i32 = arith.constant 0 : i32
    %c0_i32_0 = arith.constant 0 : i32
    %c0_i32_1 = arith.constant 0 : i32
    return %c0_i32, %c0_i32_0 : i32, i32
  }
  func.func @transform_2(%arg0: i32) -> (i32, i32) {
    %c0_i32 = arith.constant 0 : i32
    %c0_i32_0 = arith.constant 0 : i32
    %c0_i32_1 = arith.constant 0 : i32
    return %c0_i32, %c0_i32_0 : i32, i32
  }
  func.func @transform_3(%arg0: i32) -> (i32, i32) {
    %c0_i32 = arith.constant 0 : i32
    %c0_i32_0 = arith.constant 0 : i32
    %c0_i32_1 = arith.constant 0 : i32
    return %c0_i32, %c0_i32_0 : i32, i32
  }
  func.func @transform_4(%arg0: i32) -> (i32, i32) {
    %c0_i32 = arith.constant 0 : i32
    %c0_i32_0 = arith.constant 0 : i32
    %c0_i32_1 = arith.constant 0 : i32
    return %c0_i32, %c0_i32_0 : i32, i32
  }
  func.func @transform_5(%arg0: i32) -> (i32, i32) {
    %c0_i32 = arith.constant 0 : i32
    %c0_i32_0 = arith.constant 0 : i32
    return %arg0, %c0_i32 : i32, i32
  }
}

</mosaic_0001>

<llo_original>
// kernel: prenorm_forward.1
$region0: #{prenorm_forward.1}
  #allocation0 [shape = 'u32[]', space=smem, size = 0x4, offset = 0x4, fixed_abs, tag = 'smem constant byte address 0x4 - core index']
  #allocation1 [shape = 'u32[144,128]{1,0:T(1,128)}', space=vmem, size = 0x12000, scoped, tag = 'internal scratch']
  %s0 = inlined_call_operand.hbm [shape: f32[16,128], index: 0, kind: input, shape index: {}]
  %s1 = inlined_call_operand.vmem [shape: f32[1,128], index: 1, kind: input, shape index: {}]
  %s2 = inlined_call_operand.vmem [shape: f32[1,128], index: 2, kind: input, shape index: {}]
  %s3 = inlined_call_operand.hbm [shape: f32[128,128], index: 3, kind: input, shape index: {}]
  %s4 = inlined_call_operand.vmem [shape: f32[1,128], index: 4, kind: input, shape index: {}]
  %s5 = inlined_call_operand.hbm [shape: f32[16,128], index: 5, kind: output, shape index: {}]
  %s6 = sld [smem:[#allocation0]]
  $region61: #{prenorm_forward.1} parent=0
    _
  %s8 = ssub.s32 1, %s6
  %s9 = scalar_select 0, %s8, %s6
  $region1: #{prenorm_forward.1} parent=0
    #allocation2 [shape = 'u8[8192]{0}', space=vmem, size = 0x2000, scoped, tag = 'input window, operand 0']
    #allocation3 [shape = 's32[2]{0}', space=sflag, size = 0x8, scoped, tag = 'scoped memory for prenorm_forward.1']
    #allocation4 [shape = 's32[2]{0}', space=sflag, size = 0x8, scoped, tag = 'scoped memory for prenorm_forward.1']
    #allocation5 [shape = 'u8[65536]{0}', space=vmem, size = 0x10000, scoped, tag = 'input window, operand 3, single buffered']
    #allocation6 [shape = 's32[1]{0}', space=sflag, size = 0x4, scoped, tag = 'scoped memory for prenorm_forward.1']
    #allocation7 [shape = 'u8[8192]{0}', space=vmem, size = 0x2000, scoped, tag = 'output window, operand 0']
    %10 = vsyncpa [#allocation3], 0
    %s11 = scalar_lea.sflag [#allocation3], 1
    %12 = vsyncpa %s11, 0
    %13 = vsyncpa [#allocation6], 0
    %14 = vsyncpa [#allocation4], 0
    %s15 = scalar_lea.sflag [#allocation4], 1
    %16 = vsyncpa %s15, 0
    loop: start=0, step=1, limit=4
    $region2: #{prenorm_forward.1} parent=1 // loop_pre_header
      _
    $region3: #{prenorm_forward.1} parent=1 // loop_header
      %s18 = sphi 0, %s22
      %p19 = scmp.ge.s32.totalorder %s18, 4
      %s28 = sphi 0, %s30
      %s31 = sphi 0, %s28
      %s32 = sphi 0, %s31
      %s48 = sphi 0, %s32
      %s52 = sphi 0, %s52
      %s54 = sphi 0, %s52
      %s55 = sphi 0, %s54
      %s69 = sphi 0, %s55
      %s73 = sphi 0, %s73
      %s75 = sphi 0, %s73
      %s76 = sphi 0, %s75
      %s90 = sphi 0, %s76
      %s94 = sphi 0, %s94
      %s96 = sphi 0, %s94
      %s97 = sphi 0, %s96
      %s111 = sphi 0, %s97
      %s115 = sphi 0, %s115
      %s117 = sphi 0, %s115
      %s118 = sphi 0, %s117
      %s132 = sphi 0, %s118
      %s138 = sphi 0, %s140
      %s141 = sphi 0, %s138
      %s142 = sphi 0, %s141
      %s158 = sphi 0, %s142
    $region4: #{prenorm_forward.1} parent=1 // loop_header_branch
      %21 = sbr.rel (%p19) target = $region8
    $region5: #{prenorm_forward.1} parent=1 // loop_body
      %s23 = ssub.s32 %s18, 1
      %s24 = ssub.s32 %s18, 2
      %s25 = sadd.s32 %s18, 1
      %s26 = ssub.s32 %s18, %s25
      %p27 = scmp.eq.s32.totalorder %s26, 0
      %s29 = sadd.s32 %s28, 1
      %s30 = scalar_select %p27, %s28, %s29
      %p33 = pneg %p27
      %p34 = scmp.eq.s32.totalorder %s18, 1
      %p35 = por %p33, %p34
      %p36 = scmp.ne.s32.totalorder %s28, %s31
      %p37 = scmp.eq.s32.totalorder %s18, 0
      %p38 = por %p36, %p37
      %p39 = scmp.ne.s32.totalorder %s28, %s31
      %p40 = scmp.eq.s32.totalorder %s23, 1
      %p41 = por %p39, %p40
      %p42 = scmp.ne.s32.totalorder %s31, %s32
      %p43 = scmp.eq.s32.totalorder %s23, 0
      %p44 = por %p42, %p43
      %p45 = scmp.ne.s32.totalorder %s31, %s32
      %p46 = scmp.eq.s32.totalorder %s24, 1
      %p47 = por %p45, %p46
      %p49 = scmp.ne.s32.totalorder %s32, %s48
      %p50 = scmp.eq.s32.totalorder %s24, 0
      %p51 = por %p49, %p50
      %s53 = sadd.s32 %s52, 1
      %p56 = scmp.eq.s32.totalorder %s18, 1
      %p57 = scmp.ne.s32.totalorder %s52, %s54
      %p58 = scmp.eq.s32.totalorder %s18, 0
      %p59 = por %p57, %p58
      %p60 = scmp.ne.s32.totalorder %s52, %s54
      %p61 = scmp.eq.s32.totalorder %s23, 1
      %p62 = por %p60, %p61
      %p63 = scmp.ne.s32.totalorder %s54, %s55
      %p64 = scmp.eq.s32.totalorder %s23, 0
      %p65 = por %p63, %p64
      %p66 = scmp.ne.s32.totalorder %s54, %s55
      %p67 = scmp.eq.s32.totalorder %s24, 1
      %p68 = por %p66, %p67
      %p70 = scmp.ne.s32.totalorder %s55, %s69
      %p71 = scmp.eq.s32.totalorder %s24, 0
      %p72 = por %p70, %p71
      %s74 = sadd.s32 %s73, 1
      %p77 = scmp.eq.s32.totalorder %s18, 1
      %p78 = scmp.ne.s32.totalorder %s73, %s75
      %p79 = scmp.eq.s32.totalorder %s18, 0
      %p80 = por %p78, %p79
      %p81 = scmp.ne.s32.totalorder %s73, %s75
      %p82 = scmp.eq.s32.totalorder %s23, 1
      %p83 = por %p81, %p82
      %p84 = scmp.ne.s32.totalorder %s75, %s76
      %p85 = scmp.eq.s32.totalorder %s23, 0
      %p86 = por %p84, %p85
      %p87 = scmp.ne.s32.totalorder %s75, %s76
      %p88 = scmp.eq.s32.totalorder %s24, 1
      %p89 = por %p87, %p88
      %p91 = scmp.ne.s32.totalorder %s76, %s90
      %p92 = scmp.eq.s32.totalorder %s24, 0
      %p93 = por %p91, %p92
      %s95 = sadd.s32 %s94, 1
      %p98 = scmp.eq.s32.totalorder %s18, 1
      %p99 = scmp.ne.s32.totalorder %s94, %s96
      %p100 = scmp.eq.s32.totalorder %s18, 0
      %p101 = por %p99, %p100
      %p102 = scmp.ne.s32.totalorder %s94, %s96
      %p103 = scmp.eq.s32.totalorder %s23, 1
      %p104 = por %p102, %p103
      %p105 = scmp.ne.s32.totalorder %s96, %s97
      %p106 = scmp.eq.s32.totalorder %s23, 0
      %p107 = por %p105, %p106
      %p108 = scmp.ne.s32.totalorder %s96, %s97
      %p109 = scmp.eq.s32.totalorder %s24, 1
      %p110 = por %p108, %p109
      %p112 = scmp.ne.s32.totalorder %s97, %s111
      %p113 = scmp.eq.s32.totalorder %s24, 0
      %p114 = por %p112, %p113
      %s116 = sadd.s32 %s115, 1
      %p119 = scmp.eq.s32.totalorder %s18, 1
      %p120 = scmp.ne.s32.totalorder %s115, %s117
      %p121 = scmp.eq.s32.totalorder %s18, 0
      %p122 = por %p120, %p121
      %p123 = scmp.ne.s32.totalorder %s115, %s117
      %p124 = scmp.eq.s32.totalorder %s23, 1
      %p125 = por %p123, %p124
      %p126 = scmp.ne.s32.totalorder %s117, %s118
      %p127 = scmp.eq.s32.totalorder %s23, 0
      %p128 = por %p126, %p127
      %p129 = scmp.ne.s32.totalorder %s117, %s118
      %p130 = scmp.eq.s32.totalorder %s24, 1
      %p131 = por %p129, %p130
      %p133 = scmp.ne.s32.totalorder %s118, %s132
      %p134 = scmp.eq.s32.totalorder %s24, 0
      %p135 = por %p133, %p134
      %s136 = ssub.s32 %s18, %s25
      %p137 = scmp.eq.s32.totalorder %s136, 0
      %s139 = sadd.s32 %s138, 1
      %s140 = scalar_select %p137, %s138, %s139
      %p143 = pneg %p137
      %p144 = scmp.eq.s32.totalorder %s18, 1
      %p145 = por %p143, %p144
      %p146 = scmp.ne.s32.totalorder %s138, %s141
      %p147 = scmp.eq.s32.totalorder %s18, 0
      %p148 = por %p146, %p147
      %p149 = scmp.ne.s32.totalorder %s138, %s141
      %p150 = scmp.eq.s32.totalorder %s23, 1
      %p151 = por %p149, %p150
      %p152 = scmp.ne.s32.totalorder %s141, %s142
      %p153 = scmp.eq.s32.totalorder %s23, 0
      %p154 = por %p152, %p153
      %p155 = scmp.ne.s32.totalorder %s141, %s142
      %p156 = scmp.eq.s32.totalorder %s24, 1
      %p157 = por %p155, %p156
      %p159 = scmp.ne.s32.totalorder %s142, %s158
      %p160 = scmp.eq.s32.totalorder %s24, 0
      %p161 = por %p159, %p160
      %p162 = scmp.le.s32.totalorder 1, %s18
      %p163 = scmp.lt.s32.totalorder %s18, 3
      %p164 = pnand %p162, %p163
      %p165 = pneg %p164
      // Predicated region
      $region9: #{prenorm_forward.1} parent=5 // pred_check
        _
      $region10: #{prenorm_forward.1} parent=5 // pred_check_branch
        %167 = sbr.rel (%p164) target = $region12
      $region11: #{prenorm_forward.1} parent=5 // pred_region
        %s168 = ssub.s32 %s18, 1
        // Predicated region
        $region13: #{prenorm_forward.1} parent=11 // pred_check
          %p169 = pneg %p65
        $region14: #{prenorm_forward.1} parent=11 // pred_check_branch
          %171 = sbr.rel (%p169) target = $region16
        $region15: #{prenorm_forward.1} parent=11 // pred_region
          _
        $region16: #{prenorm_forward.1} parent=11 // pred_fallthru
          _
        // Predicated region
        $region17: #{prenorm_forward.1} parent=11 // pred_check
          %p172 = pneg %p86
        $region18: #{prenorm_forward.1} parent=11 // pred_check_branch
          %174 = sbr.rel (%p172) target = $region20
        $region19: #{prenorm_forward.1} parent=11 // pred_region
          _
        $region20: #{prenorm_forward.1} parent=11 // pred_fallthru
          _
        // Predicated region
        $region21: #{prenorm_forward.1} parent=11 // pred_check
          %p175 = pneg %p107
        $region22: #{prenorm_forward.1} parent=11 // pred_check_branch
          %177 = sbr.rel (%p175) target = $region24
        $region23: #{prenorm_forward.1} parent=11 // pred_region
          %s179 = ssub.s32 2048, 2048
          %180 = vsyncadd [#allocation6], %s179
          %s181 = sshll.u32 [#allocation5], 4
          %s182 = int_to_ptr.vmem [resolvable:$true] %s181
          %187 = dma.hbm_to_vmem [thread:$0]  %s3, 2048, %s182, [#allocation6], 128, 128, 8
        $region24: #{prenorm_forward.1} parent=11 // pred_fallthru
          _
        // Predicated region
        $region25: #{prenorm_forward.1} parent=11 // pred_check
          %p188 = pneg %p128
        $region26: #{prenorm_forward.1} parent=11 // pred_check_branch
          %190 = sbr.rel (%p188) target = $region28
        $region27: #{prenorm_forward.1} parent=11 // pred_region
          _
        $region28: #{prenorm_forward.1} parent=11 // pred_fallthru
          _
      $region12: #{prenorm_forward.1} parent=5 // pred_fallthru
        _
      %p191 = scmp.lt.s32.totalorder %s18, 2
      // Predicated region
      $region29: #{prenorm_forward.1} parent=5 // pred_check
        %p192 = pneg %p191
      $region30: #{prenorm_forward.1} parent=5 // pred_check_branch
        %194 = sbr.rel (%p192) target = $region32
      $region31: #{prenorm_forward.1} parent=5 // pred_region
        // Predicated region
        $region33: #{prenorm_forward.1} parent=31 // pred_check
          %p195 = pneg %p38
        $region34: #{prenorm_forward.1} parent=31 // pred_check_branch
          %197 = sbr.rel (%p195) target = $region36
        $region35: #{prenorm_forward.1} parent=31 // pred_region
          %s198 = sand.u32 %s28, 1
          %s199 = scalar_lea.sflag [#allocation3], %s198
          %s200 = sand.u32 %s28, 1
          %s201 = smul.addr %s200, 8
          %s202 = scalar_lea.vmem [#allocation2], %s201
          %s204 = ssub.s32 128, 128
          %205 = vsyncadd %s199, %s204
          %s206 = smul.addr %s18, 128
          %s207 = scalar_lea.hbm %s0, %s206
          %s209 = sshll.u32 %s202, 4
          %s210 = int_to_ptr.vmem [resolvable:$true] %s209
          %212 = dma.hbm_to_vmem [thread:$0]  %s207, 128, %s210, %s199
        $region36: #{prenorm_forward.1} parent=31 // pred_fallthru
          _
      $region32: #{prenorm_forward.1} parent=5 // pred_fallthru
        _
      %p213 = scmp.le.s32.totalorder 1, %s18
      %p214 = scmp.lt.s32.totalorder %s18, 3
      %p215 = pnand %p213, %p214
      %p216 = pneg %p215
      // Predicated region
      $region37: #{prenorm_forward.1} parent=5 // pred_check
        _
      $region38: #{prenorm_forward.1} parent=5 // pred_check_branch
        %218 = sbr.rel (%p215) target = $region40
      $region39: #{prenorm_forward.1} parent=5 // pred_region
        %s219 = ssub.s32 %s18, 1
        %s220 = sand.u32 %s31, 1
        %s221 = scalar_lea.sflag [#allocation3], %s220
        %s222 = sand.u32 %s31, 1
        %s223 = smul.addr %s222, 8
        %s224 = scalar_lea.vmem [#allocation2], %s223
        // Predicated region
        $region41: #{prenorm_forward.1} parent=39 // pred_check
          %p225 = pneg %p44
        $region42: #{prenorm_forward.1} parent=39 // pred_check_branch
          %227 = sbr.rel (%p225) target = $region44
        $region43: #{prenorm_forward.1} parent=39 // pred_region
          %228 = dma.done %s221, 128
        $region44: #{prenorm_forward.1} parent=39 // pred_fallthru
          _
        // Predicated region
        $region45: #{prenorm_forward.1} parent=39 // pred_check
          %p229 = pneg %p107
        $region46: #{prenorm_forward.1} parent=39 // pred_check_branch
          %231 = sbr.rel (%p229) target = $region48
        $region47: #{prenorm_forward.1} parent=39 // pred_region
          %232 = dma.done [#allocation6], 2048
        $region48: #{prenorm_forward.1} parent=39 // pred_fallthru
          _
        %s233 = sand.u32 %s31, 1
        %s234 = scalar_lea.sflag [#allocation3], %s233
        %s235 = sand.u32 %s31, 1
        %s236 = smul.addr %s235, 8
        %s237 = scalar_lea.vmem [#allocation2], %s236
        %p238 = pneg %p44
        %p239 = pneg %p41
        %p240 = pneg %p65
        %p241 = pneg %p62
        %p242 = pneg %p86
        %p243 = pneg %p83
        %p244 = pneg %p107
        %p245 = pneg %p104
        %p246 = pneg %p128
        %p247 = pneg %p125
        %p248 = pneg %p154
        %p249 = pneg %p151
        %s250 = sand.u32 %s141, 1
        %s251 = scalar_lea.sflag [#allocation4], %s250
        %s252 = sand.u32 %s141, 1
        %s253 = smul.addr %s252, 8
        %s254 = scalar_lea.vmem [#allocation7], %s253
        %v255 = vld [vmem:[%s224] sm:$0xff]
        %256 = vadd.xlane.f32.xlu0 %v255
        %v257 = vpop.xlane.xlu0 %256
        %v258 = vrcp.pop 128.0
        %v259 = vmul.f32 %v257, %v258
        %v260 = vsub.f32 %v255, %v259
        %v261 = vmul.f32 %v260, %v260
        %262 = vadd.xlane.f32.xlu0 %v261
        %v263 = vpop.xlane.xlu0 %262
        %v264 = vmul.f32 %v263, %v258
        %v265 = vadd.f32 %v264, 1e-05
        %v266 = vrsqrt.pop %v265
        %v267 = vmul.f32 %v260, %v266
        %v268 = vld [vmem:[%s1] sm:$0x1]
        %v270 = vlaneseq
        %v271 = vshrl.u32 %v270, 7
        %v272 = vsub.s32 0, %v271
        %v273 = vrot.slane %v268, %v272
        %v275 = vmul.f32 %v267, %v273
        %v276 = vld [vmem:[%s2] sm:$0x1]
        %v278 = vlaneseq
        %v279 = vshrl.u32 %v278, 7
        %v280 = vsub.s32 0, %v279
        %v281 = vrot.slane %v276, %v280
        %v283 = vadd.f32 %v275, %v281
        %v284 = vld [vmem:[#allocation5] sm:$0xff]
        %v285 = vld [vmem:[#allocation5 + $0x8] sm:$0xff]
        %v286 = vld [vmem:[#allocation5 + $0x10] sm:$0xff]
        %v287 = vld [vmem:[#allocation5 + $0x18] sm:$0xff]
        %v288 = vld [vmem:[#allocation5 + $0x20] sm:$0xff]
        %v289 = vld [vmem:[#allocation5 + $0x28] sm:$0xff]
        %v290 = vld [vmem:[#allocation5 + $0x30] sm:$0xff]
        %v291 = vld [vmem:[#allocation5 + $0x38] sm:$0xff]
        %v292 = vld [vmem:[#allocation5 + $0x40] sm:$0xff]
        %v293 = vld [vmem:[#allocation5 + $0x48] sm:$0xff]
        %v294 = vld [vmem:[#allocation5 + $0x50] sm:$0xff]
        %v295 = vld [vmem:[#allocation5 + $0x58] sm:$0xff]
        %v296 = vld [vmem:[#allocation5 + $0x60] sm:$0xff]
        %v297 = vld [vmem:[#allocation5 + $0x68] sm:$0xff]
        %v298 = vld [vmem:[#allocation5 + $0x70] sm:$0xff]
        %v299 = vld [vmem:[#allocation5 + $0x78] sm:$0xff]
        %v300 = vld [vmem:[%s4] sm:$0x1]
        %v302 = vlaneseq
        %v303 = vshrl.u32 %v302, 7
        %v304 = vsub.s32 0, %v303
        %v305 = vrot.slane %v300, %v304
        %307 = vmatprep.subr.mxu0 0.0
        %308 = vmatpush1.msra.mxu0 %v284
        %309 = vmatprep.subr.mxu0 0.0
        %310 = vmatpush1.msra.mxu0 %v285
        %311 = vmatprep.subr.mxu0 0.0
        %312 = vmatpush1.msra.mxu0 %v286
        %313 = vmatprep.subr.mxu0 0.0
        %314 = vmatpush1.msra.mxu0 %v287
        %315 = vmatprep.subr.mxu0 0.0
        %316 = vmatpush1.msra.mxu0 %v288
        %317 = vmatprep.subr.mxu0 0.0
        %318 = vmatpush1.msra.mxu0 %v289
        %319 = vmatprep.subr.mxu0 0.0
        %320 = vmatpush1.msra.mxu0 %v290
        %321 = vmatprep.subr.mxu0 0.0
        %322 = vmatpush1.msra.mxu0 %v291
        %323 = vmatprep.subr.mxu0 0.0
        %324 = vmatpush1.msra.mxu0 %v292
        %325 = vmatprep.subr.mxu0 0.0
        %326 = vmatpush1.msra.mxu0 %v293
        %327 = vmatprep.subr.mxu0 0.0
        %328 = vmatpush1.msra.mxu0 %v294
        %329 = vmatprep.subr.mxu0 0.0
        %330 = vmatpush1.msra.mxu0 %v295
        %331 = vmatprep.subr.mxu0 0.0
        %332 = vmatpush1.msra.mxu0 %v296
        %333 = vmatprep.subr.mxu0 0.0
        %334 = vmatpush1.msra.mxu0 %v297
        %335 = vmatprep.subr.mxu0 0.0
        %336 = vmatpush1.msra.mxu0 %v298
        %337 = vmatprep.subr.mxu0 0.0
        %338 = vmatpush1.msra.mxu0 %v299
        %339 = vmatprep.subr.mxu0 0.0
        %340 = vmatpush1.msra.mxu0 0.0
        %341 = vmatprep.subr.mxu0 0.0
        %342 = vmatpush1.msra.mxu0 0.0
        %343 = vmatprep.subr.mxu0 0.0
        %344 = vmatpush1.msra.mxu0 0.0
        %345 = vmatprep.subr.mxu0 0.0
        %346 = vmatpush1.msra.mxu0 0.0
        %347 = vmatprep.subr.mxu0 0.0
        %348 = vmatpush1.msra.mxu0 0.0
        %349 = vmatprep.subr.mxu0 0.0
        %350 = vmatpush1.msra.mxu0 0.0
        %351 = vmatprep.subr.mxu0 0.0
        %352 = vmatpush1.msra.mxu0 0.0
        %353 = vmatprep.subr.mxu0 0.0
        %354 = vmatpush1.msra.mxu0 0.0
        %355 = vmatprep.subr.mxu0 0.0
        %356 = vmatpush1.msra.mxu0 0.0
        %357 = vmatprep.subr.mxu0 0.0
        %358 = vmatpush1.msra.mxu0 0.0
        %359 = vmatprep.subr.mxu0 0.0
        %360 = vmatpush1.msra.mxu0 0.0
        %361 = vmatprep.subr.mxu0 0.0
        %362 = vmatpush1.msra.mxu0 0.0
        %363 = vmatprep.subr.mxu0 0.0
        %364 = vmatpush1.msra.mxu0 0.0
        %365 = vmatprep.subr.mxu0 0.0
        %366 = vmatpush1.msra.mxu0 0.0
        %367 = vmatprep.subr.mxu0 0.0
        %368 = vmatpush1.msra.mxu0 0.0
        %369 = vmatprep.subr.mxu0 0.0
        %370 = vmatpush1.msra.mxu0 0.0
        %371 = vmatprep.mubr.f32.mxu0 0.0
        %372 = vmatmul.mubr.f32.gmra.mrb[0].mxu0 %v283
        %v373 = vpop.f32.mrb[0].mxu0
        %v374 = vadd.f32 %v305, %v373
        %v375 = vpop.f32.mrb[0].mxu0
        %376 = vdwg.mxu0
        %377 = vst [vmem:[%s254] sm:$0xff] %v374
        %s378 = sand.u32 %s141, 1
        %s379 = scalar_lea.sflag [#allocation4], %s378
        %s380 = sand.u32 %s141, 1
        %s381 = smul.addr %s380, 8
        %s382 = scalar_lea.vmem [#allocation7], %s381
        // Predicated region
        $region49: #{prenorm_forward.1} parent=39 // pred_check
          %p383 = pneg %p151
        $region50: #{prenorm_forward.1} parent=39 // pred_check_branch
          %385 = sbr.rel (%p383) target = $region52
        $region51: #{prenorm_forward.1} parent=39 // pred_region
          %s387 = ssub.s32 128, 128
          %388 = vsyncadd %s379, %s387
          %s389 = smul.addr %s23, 128
          %s390 = scalar_lea.hbm %s5, %s389
          %s392 = sshll.u32 %s382, 4
          %s393 = int_to_ptr.vmem [resolvable:$true] %s392
          %395 = dma.vmem_to_hbm [thread:$0]  %s393, 128, %s390, %s379
        $region52: #{prenorm_forward.1} parent=39 // pred_fallthru
          _
      $region40: #{prenorm_forward.1} parent=5 // pred_fallthru
        _
      %p396 = scmp.le.s32.totalorder 2, %s18
      // Predicated region
      $region53: #{prenorm_forward.1} parent=5 // pred_check
        %p397 = pneg %p396
      $region54: #{prenorm_forward.1} parent=5 // pred_check_branch
        %399 = sbr.rel (%p397) target = $region56
      $region55: #{prenorm_forward.1} parent=5 // pred_region
        %s400 = ssub.s32 %s18, 2
        // Predicated region
        $region57: #{prenorm_forward.1} parent=55 // pred_check
          %p401 = pneg %p157
        $region58: #{prenorm_forward.1} parent=55 // pred_check_branch
          %403 = sbr.rel (%p401) target = $region60
        $region59: #{prenorm_forward.1} parent=55 // pred_region
          %s404 = sand.u32 %s142, 1
          %s405 = scalar_lea.sflag [#allocation4], %s404
          %s406 = sand.u32 %s142, 1
          %s407 = smul.addr %s406, 8
          %s408 = scalar_lea.vmem [#allocation7], %s407
          %409 = dma.done %s405, 128
        $region60: #{prenorm_forward.1} parent=55 // pred_fallthru
          _
      $region56: #{prenorm_forward.1} parent=5 // pred_fallthru
        _
    $region6: #{prenorm_forward.1} parent=1 // loop_footer
      %s22 = sadd.s32 1, %s18
    $region7: #{prenorm_forward.1} parent=1 // loop_footer_branch
      %17 = sbr.rel target = $region3
    $region8: #{prenorm_forward.1} parent=1 // loop_exit
      _
    %410 = vsyncpa [#allocation3], 1
    %s411 = scalar_lea.sflag [#allocation3], 1
    %412 = vsyncpa %s411, 1
    %413 = vsyncpa [#allocation6], 1
    %414 = vsyncpa [#allocation4], 1
    %s415 = scalar_lea.sflag [#allocation4], 1
    %416 = vsyncpa %s415, 1

</llo_original>
